<compile_context>
chip_gen: v7x
topology: tpu7x:2x2x1
jax: 0.10.0
libtpu: 0.0.40
codegen_flags: <defaults>
</compile_context>

<pallas_src>
import functools

import jax
import jax.numpy as jnp
from jax.experimental import pallas as pl
from jax.experimental.pallas import tpu as pltpu


_VMEM_BUDGET = 20 * 1024 * 1024   # per-step working-set target (fits every generation's default scoped VMEM)


# ----------------------------- activations ----------------------------------
def _hswish(x):
    return x * jnp.clip(x + 3.0, 0.0, 6.0) * (1.0 / 6.0)


def _relu(x):
    return jnp.maximum(x, 0.0)


_ACTS = {"hardswish": _hswish, "relu": _relu, None: (lambda x: x)}


# ------------------------------ small helpers --------------------------------
def _round_up(x, m):
    return ((x + m - 1) // m) * m


def _largest_divisor(n, cap, multiple_of=1):
    """Largest d <= cap with d | n and multiple_of | d (None if impossible)."""
    cap = max(min(cap, n), 1)
    for d in range(cap, 0, -1):
        if n % d == 0 and d % multiple_of == 0:
            return d
    return None


def _compiler_params(dims, est_bytes):
    limit = int(min(max(2 * est_bytes + (8 << 20), 32 << 20), 100 << 20))
    return pltpu.CompilerParams(dimension_semantics=dims, vmem_limit_bytes=limit)


# ------------------------------- kernels -------------------------------------
def _pw_conv_bn_act_kernel(x_ref, w_ref, b_ref, o_ref, *, act):
    """1x1 conv (channel matmul) + folded BN + activation, NCHW-flat layout.

    x_ref: (1, Cin, T)   w_ref: (Cout, Cin) [BN scale folded, native dtype]
    b_ref: (Cout, 1) f32 o_ref: (1, Cout, T)   (T lane-dense, multiple of 128)
    """
    y = jnp.dot(w_ref[...], x_ref[0], preferred_element_type=jnp.float32)
    y = y + b_ref[...]                                   # per-channel bias (broadcast over lanes)
    o_ref[0] = _ACTS[act](y).astype(o_ref.dtype)


def _dw_conv_bn_act_kernel(x_hbm, w_ref, b_ref, o_ref, buf, sem, *, k, act):
    """Depthwise kxk conv (dense / stride-1), NCHW, row-tiled with halo.

    x_hbm: (N, C, Hp, Wp) padded input, left in HBM (memory_space=pl.ANY)
    w_ref: (k*k, TC, 1, 1) f32 [BN scale folded]   b_ref: (TC, 1, 1) f32
    o_ref: (1, TC, TH, Wd) dense output block
    buf:   (TC, TH + k - 1, Wp) VMEM slab scratch  sem: DMA semaphore
    """
    n, ci, ri = pl.program_id(0), pl.program_id(1), pl.program_id(2)
    TC, RH, Wp = buf.shape
    _, _, TH, Wd = o_ref.shape
    c0 = ci * TC
    r0 = ri * TH
    if TH % 8 == 0:
        r0 = pl.multiple_of(r0, 8)
    cp = pltpu.make_async_copy(
        x_hbm.at[n, pl.ds(c0, TC), pl.ds(r0, RH), :], buf, sem)
    cp.start()
    cp.wait()  # TODO(synk): cross-grid-step double-buffer prefetch to overlap this DMA with compute.

    acc = jnp.zeros((TC, TH, Wd), jnp.float32)
    for kh in range(k):                                  # one slab load per kh row-band
        band = buf[:, kh:kh + TH, :].astype(jnp.float32)  # (TC, TH, Wp); elementwise math in f32
        for kw in range(k):                              # kw shifts are in-register lane slices
            acc = acc + band[:, :, kw:kw + Wd] * w_ref[kh * k + kw]
    y = acc + b_ref[...]
    o_ref[0] = _ACTS[act](y).astype(o_ref.dtype)


def _full_conv_bn_act_kernel(x_hbm, w_ref, b_ref, o_ref, buf, sem, acc_ref, *, k, act):
    """Full kxk conv (groups=1, dense / stride-1), NHWC, row-tiled with halo.

    x_hbm: (N, Hp, Wp, Cin) padded input in HBM (memory_space=pl.ANY)
    w_ref: (k, k, Cin, Cout) [BN scale folded, native dtype]  b_ref: (1, Cout) f32
    o_ref: (1, TH, Wd, Cout)
    buf:   (TH + k - 1, Wp, Cin) VMEM slab   acc_ref: (TH*Wd, Cout) f32 VMEM accumulator
    """
    n, ri = pl.program_id(0), pl.program_id(1)
    RH, Wp, Cin = buf.shape
    _, TH, Wd, Cout = o_ref.shape
    r0 = ri * TH
    cp = pltpu.make_async_copy(x_hbm.at[n, pl.ds(r0, RH), :, :], buf, sem)
    cp.start()
    cp.wait()  # TODO(synk): prefetch the next row slab while computing this one.

    acc_ref[...] = jnp.zeros_like(acc_ref)
    # TODO(synk): merge the k*k taps into a single MXU contraction (im2col-on-the-fly,
    # K = k*k*Cin) for better MXU utilization on the tiny-Cin stem conv.
    for kh in range(k):
        for kw in range(k):
            patch = buf[kh:kh + TH, kw:kw + Wd, :]       # native dtype -> MXU
            acc_ref[...] += jnp.dot(patch.reshape(TH * Wd, Cin), w_ref[kh, kw],
                                    preferred_element_type=jnp.float32)
    y = acc_ref[...] + b_ref[...]
    o_ref[0] = _ACTS[act](y).astype(o_ref.dtype).reshape(TH, Wd, Cout)


# ------------------------------ pallas wrappers ------------------------------
def pointwise_conv_bn_act(x_flat, w, b, act):
    """x_flat: (N, Cin, HW)  w: (Cout, Cin)  b: (Cout, 1) f32  ->  (N, Cout, HW)."""
    N, Cin, HW = x_flat.shape
    Cout = w.shape[0]
    esz = x_flat.dtype.itemsize

    HWp = _round_up(HW, 128)                             # lane-dense, unmasked stores
    if HWp != HW:
        x_flat = jnp.pad(x_flat, ((0, 0), (0, 0), (0, HWp - HW)))

    # VMEM-aware tile: 2 * (Cin*T + Cout*T) double-buffered blocks + resident weight.
    t_cap = max((_VMEM_BUDGET - Cout * Cin * esz) // (2 * (Cin + Cout) * esz), 128)
    t_cap = int(min(t_cap, 2048))
    T = _largest_divisor(HWp // 128, max(t_cap // 128, 1)) * 128
    est = 2 * T * (Cin + Cout) * esz + Cout * Cin * esz + Cout * 4

    kern = functools.partial(_pw_conv_bn_act_kernel, act=act)
    out = pl.pallas_call(
        kern,
        out_shape=jax.ShapeDtypeStruct((N, Cout, HWp), x_flat.dtype),
        grid=(N, HWp // T),
        in_specs=[
            pl.BlockSpec((1, Cin, T), lambda n, t: (n, 0, t)),
            pl.BlockSpec((Cout, Cin), lambda n, t: (0, 0)),   # resident weight
            pl.BlockSpec((Cout, 1), lambda n, t: (0, 0)),     # resident bias
        ],
        out_specs=pl.BlockSpec((1, Cout, T), lambda n, t: (n, 0, t)),
        compiler_params=_compiler_params(("parallel", "parallel"), est),
    )(x_flat, w, b)
    if HWp != HW:
        out = out[..., :HW]
    return out


def depthwise_conv_bn_act(x_pad, w_taps, b, k, Hd, Wd, act):
    """x_pad: (N, C, Hp, Wp) zero-padded NCHW  ->  dense (stride-1) output (N, C, Hd, Wd)."""
    N, C, Hp, Wp = x_pad.shape
    esz = x_pad.dtype.itemsize

    # Row tile (multiple of 8 so the output block is layout-legal) and channel tile
    # chosen so slab + double-buffered output + f32 temps stay within budget.
    TH = _largest_divisor(Hd, min(Hd, 64), multiple_of=8) or Hd
    RH = TH + k - 1
    per_c = RH * Wp * esz + 2 * TH * Wd * esz + 2 * TH * Wd * 4
    TC = _largest_divisor(C, max(int(_VMEM_BUDGET // max(per_c, 1)), 1)) or 1
    est = TC * per_c + k * k * TC * 4

    kern = functools.partial(_dw_conv_bn_act_kernel, k=k, act=act)
    return pl.pallas_call(
        kern,
        out_shape=jax.ShapeDtypeStruct((N, C, Hd, Wd), x_pad.dtype),
        grid=(N, C // TC, Hd // TH),
        in_specs=[
            pl.BlockSpec(memory_space=pl.ANY),                         # stays in HBM; slab DMA'd per step
            pl.BlockSpec((k * k, TC, 1, 1), lambda n, ci, ri: (0, ci, 0, 0)),
            pl.BlockSpec((TC, 1, 1), lambda n, ci, ri: (ci, 0, 0)),
        ],
        out_specs=pl.BlockSpec((1, TC, TH, Wd), lambda n, ci, ri: (n, ci, ri, 0)),
        scratch_shapes=[
            pltpu.VMEM((TC, RH, Wp), x_pad.dtype),
            pltpu.SemaphoreType.DMA(()),
        ],
        compiler_params=_compiler_params(("parallel", "parallel", "parallel"), est),
    )(x_pad, w_taps, b)


def full_conv_bn_act(x_pad, w, b, k, Hd, Wd, act):
    """x_pad: (N, Hp, Wp, Cin) zero-padded NHWC  ->  dense (stride-1) output (N, Hd, Wd, Cout)."""
    N, Hp, Wp, Cin = x_pad.shape
    Cout = w.shape[3]
    esz = x_pad.dtype.itemsize

    def slab_bytes(th):
        return ((th + k - 1) * Wp * Cin * esz            # input slab
                + 2 * th * Wd * Cout * esz               # double-buffered output block
                + 2 * th * Wd * Cout * 4)                # f32 accumulator + temps

    TH = 1
    for d in range(1, Hd + 1):
        if Hd % d == 0 and d <= 256 and slab_bytes(d) <= _VMEM_BUDGET:
            TH = d
    RH = TH + k - 1
    est = slab_bytes(TH) + k * k * Cin * Cout * esz

    kern = functools.partial(_full_conv_bn_act_kernel, k=k, act=act)
    return pl.pallas_call(
        kern,
        out_shape=jax.ShapeDtypeStruct((N, Hd, Wd, Cout), x_pad.dtype),
        grid=(N, Hd // TH),
        in_specs=[
            pl.BlockSpec(memory_space=pl.ANY),                         # HBM; slab DMA'd per step
            pl.BlockSpec((k, k, Cin, Cout), lambda n, ri: (0, 0, 0, 0)),
            pl.BlockSpec((1, Cout), lambda n, ri: (0, 0)),
        ],
        out_specs=pl.BlockSpec((1, TH, Wd, Cout), lambda n, ri: (n, ri, 0, 0)),
        scratch_shapes=[
            pltpu.VMEM((RH, Wp, Cin), x_pad.dtype),
            pltpu.SemaphoreType.DMA(()),
            pltpu.VMEM((TH * Wd, Cout), jnp.float32),
        ],
        compiler_params=_compiler_params(("parallel", "parallel"), est),
    )(x_pad, w, b)


# ------------------------------ ConvBNLayer forward ---------------------------
def conv_bn_layer_forward(params, x_nchw, *, stride=1, padding=0, groups=1,
                          if_act=True, act=None):
    """Pallas ConvBNLayer forward. x_nchw: (N, Cin, H, W) -> (N, Cout, Ho, Wo)."""
    w = params["w"]                           # (Cout, Cin//groups, k, k), torch layout
    Cout, Cin_g, k, _ = w.shape
    N, Cin, H, W = x_nchw.shape

    # Fold eval-mode BatchNorm into a per-channel scale/bias; fold scale into W.
    scale = params["gamma"] * jax.lax.rsqrt(params["var"] + 1e-5)
    bias = (params["beta"] - params["mean"] * scale).astype(jnp.float32)
    act_key = act if if_act else None
    Ho = (H + 2 * padding - k) // stride + 1
    Wo = (W + 2 * padding - k) // stride + 1
    cdt = x_nchw.dtype                        # MXU operand dtype (bf16 inputs stay bf16; f32 accum)

    # ---- pointwise path: 1x1, groups=1 -> channel matmul in NCHW-flat layout ----
    if k == 1 and groups == 1:
        xw = x_nchw
        if padding:
            xw = jnp.pad(xw, ((0, 0), (0, 0), (padding, padding), (padding, padding)))
        if stride > 1:
            xw = xw[:, :, ::stride, ::stride]           # exact for 1x1: stride == input subsample
        x_flat = xw.reshape(N, Cin, Ho * Wo)
        w_pw = (w.reshape(Cout, Cin).astype(jnp.float32) * scale[:, None]).astype(cdt)
        b_pw = bias.reshape(Cout, 1)
        out = pointwise_conv_bn_act(x_flat, w_pw, b_pw, act_key)
        return out.reshape(N, Cout, Ho, Wo)

    Hp, Wp = H + 2 * padding, W + 2 * padding
    Hd, Wd = Hp - k + 1, Wp - k + 1                     # dense (stride-1) output extent

    # ---- depthwise path: native NCHW (W on lanes), no transposes ----
    if groups == Cin and groups == Cout and Cin_g == 1:
        xw = x_nchw
        if padding:
            # TODO(synk): fold the zero padding into the kernel's slab DMA (edge masking)
            # instead of a jnp.pad round trip through HBM.
            xw = jnp.pad(xw, ((0, 0), (0, 0), (padding, padding), (padding, padding)))
        w_dw = w[:, 0, :, :].astype(jnp.float32) * scale[:, None, None]      # (C, k, k)
        w_taps = jnp.transpose(w_dw, (1, 2, 0)).reshape(k * k, Cout, 1, 1)   # tap-major, f32
        b_dw = bias.reshape(Cout, 1, 1)
        y = depthwise_conv_bn_act(xw, w_taps, b_dw, k, Hd, Wd, act_key)
        if stride > 1:
            # TODO(synk): emit the strided output directly from the kernel (strided taps /
            # phase decomposition) instead of dense compute + wrapper subsample.
            y = y[:, :, ::stride, ::stride]
        return y

    # ---- full kxk conv (groups=1), e.g. the 3-channel stem ----
    if groups == 1:
        # TODO(synk): keep an NHWC layout across consecutive layers so this transpose is not
        # paid per layer (only the tiny stem conv uses this path in MobileNetV3).
        x_nhwc = jnp.transpose(x_nchw, (0, 2, 3, 1))
        if padding:
            x_nhwc = jnp.pad(
                x_nhwc, ((0, 0), (padding, padding), (padding, padding), (0, 0)))
        w_f = (jnp.transpose(w, (2, 3, 1, 0)).astype(jnp.float32) * scale).astype(cdt)
        b_f = bias.reshape(1, Cout)
        y = full_conv_bn_act(x_nhwc, w_f, b_f, k, Hd, Wd, act_key)
        if stride > 1:
            # TODO(synk): strided output directly from the kernel (stem conv only).
            y = y[:, ::stride, ::stride, :]
        return jnp.transpose(y, (0, 3, 1, 2))

    # TODO(synk): grouped conv with 1 < groups < in_channels is unused by MobileNetV3.
    raise NotImplementedError("grouped conv with 1 < groups < in_channels")


# ------------------------------ reference + params ----------------------------
def conv_bn_layer_reference(params, x_nchw, *, stride=1, padding=0, groups=1,
                            if_act=True, act=None):
    """Pure-JAX/XLA reference (eval-mode BN), for correctness checking."""
    y = jax.lax.conv_general_dilated(
        x_nchw.astype(jnp.float32), params["w"].astype(jnp.float32),
        window_strides=(stride, stride),
        padding=[(padding, padding), (padding, padding)],
        dimension_numbers=("NCHW", "OIHW", "NCHW"),
        feature_group_count=groups,
        precision=jax.lax.Precision.HIGHEST)
    scale = params["gamma"] * jax.lax.rsqrt(params["var"] + 1e-5)
    bias = params["beta"] - params["mean"] * scale
    y = y * scale[None, :, None, None] + bias[None, :, None, None]
    if if_act:
        y = _ACTS[act](y)
    return y


def init_conv_bn_params(key, cin, cout, k, groups):
    ks = jax.random.split(key, 5)
    return {
        "w": 0.3 * jax.random.normal(ks[0], (cout, cin // groups, k, k), jnp.float32),
        "gamma": 1.0 + 0.1 * jax.random.normal(ks[1], (cout,), jnp.float32),
        "beta": 0.1 * jax.random.normal(ks[2], (cout,), jnp.float32),
        "mean": 0.1 * jax.random.normal(ks[3], (cout,), jnp.float32),
        "var": jax.random.uniform(ks[4], (cout,), jnp.float32, 0.5, 1.5),
    }


# ---------------------------------- main --------------------------------------
if __name__ == "__main__":
    root = jax.random.PRNGKey(0)
    N, H, W = 2, 16, 16
    configs = [
        dict(name="pointwise_1x1", cin=4, cout=32, k=1, stride=1, padding=0,
             groups=1, if_act=True, act="hardswish"),
        dict(name="depthwise_3x3", cin=32, cout=32, k=3, stride=1, padding=1,
             groups=32, if_act=True, act="relu"),
        dict(name="full_3x3_s2", cin=4, cout=16, k=3, stride=2, padding=1,
             groups=1, if_act=False, act=None),
    ]

    for i, cfg in enumerate(configs):
        kp, kx = jax.random.split(jax.random.fold_in(root, i))
        params = init_conv_bn_params(kp, cfg["cin"], cfg["cout"], cfg["k"], cfg["groups"])
        x = jax.random.normal(kx, (N, cfg["cin"], H, W), jnp.float32)

        out = conv_bn_layer_forward(
            params, x, stride=cfg["stride"], padding=cfg["padding"],
            groups=cfg["groups"], if_act=cfg["if_act"], act=cfg["act"])
        out = jax.block_until_ready(out)

        Ho = (H + 2 * cfg["padding"] - cfg["k"]) // cfg["stride"] + 1
        Wo = (W + 2 * cfg["padding"] - cfg["k"]) // cfg["stride"] + 1
        assert out.shape == (N, cfg["cout"], Ho, Wo), (cfg["name"], out.shape)

        ref = conv_bn_layer_reference(
            params, x, stride=cfg["stride"], padding=cfg["padding"],
            groups=cfg["groups"], if_act=cfg["if_act"], act=cfg["act"])
        err = float(jnp.max(jnp.abs(out - ref)))
        assert jnp.allclose(out, ref, atol=2e-2, rtol=2e-2), (cfg["name"], err)

    print("KERNEL_OK")
</pallas_src>

<mosaic_0001>
module attributes {stable_mosaic.version = 11 : i64} {
  func.func @_pw_conv_bn_act_kernel(%arg0: i32, %arg1: i32, %arg2: memref<1x4x256xf32, #tpu.memory_space<vmem>>, %arg3: memref<32x4xf32, #tpu.memory_space<vmem>>, %arg4: memref<32x1xf32, #tpu.memory_space<vmem>>, %arg5: memref<1x32x256xf32, #tpu.memory_space<vmem>>) attributes {dimension_semantics = [#tpu.dimension_semantics<parallel>, #tpu.dimension_semantics<parallel>], iteration_bounds = array<i64: 2, 1>, scalar_prefetch = 0 : i64, scratch_operands = 0 : i64, tpu.core_type = #tpu.core_type<tc>, window_params = [{transform_indices = @transform_0, window_bounds = array<i64: 1, 4, 256>}, {pipeline_mode = #tpu.pipeline_mode<synchronous>, transform_indices = @transform_1, window_bounds = array<i64: 32, 4>}, {pipeline_mode = #tpu.pipeline_mode<synchronous>, transform_indices = @transform_2, window_bounds = array<i64: 32, 1>}, {transform_indices = @transform_3, window_bounds = array<i64: 1, 32, 256>}]} {
    %c0 = arith.constant 0 : index
    %c0_0 = arith.constant 0 : index
    %0 = vector.load %arg3[%c0, %c0_0] : memref<32x4xf32, #tpu.memory_space<vmem>>, vector<32x4xf32>
    %c0_1 = arith.constant 0 : index
    %c0_2 = arith.constant 0 : index
    %c0_3 = arith.constant 0 : index
    %1 = vector.load %arg2[%c0_1, %c0_2, %c0_3] : memref<1x4x256xf32, #tpu.memory_space<vmem>>, vector<1x4x256xf32>
    %2 = vector.shape_cast %1 : vector<1x4x256xf32> to vector<4x256xf32>
    %cst = arith.constant dense<0.000000e+00> : vector<32x256xf32>
    %3 = tpu.matmul %0, %2, %cst {dimension_numbers = #tpu.dot_dimension_numbers<[1], [0], [0], [1], [0, 0, 1, 1], [], []>} : vector<32x4xf32>, vector<4x256xf32>, vector<32x256xf32> -> vector<32x256xf32>
    %c0_4 = arith.constant 0 : index
    %c0_5 = arith.constant 0 : index
    %4 = vector.load %arg4[%c0_4, %c0_5] : memref<32x1xf32, #tpu.memory_space<vmem>>, vector<32x1xf32>
    %5 = vector.broadcast %4 : vector<32x1xf32> to vector<32x256xf32>
    %6 = arith.addf %3, %5 : vector<32x256xf32>
    %cst_6 = arith.constant 3.000000e+00 : f32
    %7 = vector.broadcast %cst_6 : f32 to vector<32x256xf32>
    %8 = arith.addf %6, %7 : vector<32x256xf32>
    %cst_7 = arith.constant 0.000000e+00 : f32
    %cst_8 = arith.constant 6.000000e+00 : f32
    %9 = vector.broadcast %cst_7 : f32 to vector<32x256xf32>
    %10 = arith.maximumf %9, %8 : vector<32x256xf32>
    %11 = vector.broadcast %cst_8 : f32 to vector<32x256xf32>
    %12 = arith.minimumf %11, %10 : vector<32x256xf32>
    %13 = arith.mulf %6, %12 : vector<32x256xf32>
    %cst_9 = arith.constant 0.166666672 : f32
    %14 = vector.broadcast %cst_9 : f32 to vector<32x256xf32>
    %15 = arith.mulf %13, %14 : vector<32x256xf32>
    %c0_10 = arith.constant 0 : index
    %c0_11 = arith.constant 0 : index
    %c0_12 = arith.constant 0 : index
    %16 = vector.load %arg5[%c0_10, %c0_11, %c0_12] : memref<1x32x256xf32, #tpu.memory_space<vmem>>, vector<1x32x256xf32>
    %17 = vector.shape_cast %16 : vector<1x32x256xf32> to vector<32x256xf32>
    %18 = vector.shape_cast %15 : vector<32x256xf32> to vector<1x32x256xf32>
    tpu.vector_store %arg5[%c0_10, %c0_11, %c0_12], %18 {strides = array<i32>} : memref<1x32x256xf32, #tpu.memory_space<vmem>>, vector<1x32x256xf32>,
    return
  }
  func.func @transform_0(%arg0: i32, %arg1: i32) -> (i32, i32, i32) {
    %c0_i32 = arith.constant 0 : i32
    %c0_i32_0 = arith.constant 0 : i32
    return %arg0, %c0_i32, %arg1 : i32, i32, i32
  }
  func.func @transform_1(%arg0: i32, %arg1: i32) -> (i32, i32) {
    %c0_i32 = arith.constant 0 : i32
    %c0_i32_0 = arith.constant 0 : i32
    %c0_i32_1 = arith.constant 0 : i32
    return %c0_i32, %c0_i32_0 : i32, i32
  }
  func.func @transform_2(%arg0: i32, %arg1: i32) -> (i32, i32) {
    %c0_i32 = arith.constant 0 : i32
    %c0_i32_0 = arith.constant 0 : i32
    %c0_i32_1 = arith.constant 0 : i32
    return %c0_i32, %c0_i32_0 : i32, i32
  }
  func.func @transform_3(%arg0: i32, %arg1: i32) -> (i32, i32, i32) {
    %c0_i32 = arith.constant 0 : i32
    %c0_i32_0 = arith.constant 0 : i32
    return %arg0, %c0_i32, %arg1 : i32, i32, i32
  }
}

</mosaic_0001>

<llo_original>
// kernel: tpu_custom_call.1
$region0: #{tpu_custom_call.1}
  #allocation0 [shape = 'u32[]', space=smem, size = 0x4, offset = 0x4, fixed_abs, tag = 'smem constant byte address 0x4 - core index']
  #allocation1 [shape = 'u32[144,128]{1,0:T(1,128)}', space=vmem, size = 0x12000, scoped, tag = 'internal scratch']
  %s0 = inlined_call_operand.vmem [shape: f32[2,4,256], index: 0, kind: input, shape index: {}]
  %s1 = inlined_call_operand.vmem [shape: f32[32,4], index: 1, kind: input, shape index: {}]
  %s2 = inlined_call_operand.vmem [shape: f32[32,1], index: 2, kind: input, shape index: {}]
  %s3 = inlined_call_operand.hbm [shape: f32[2,32,256], index: 3, kind: output, shape index: {}]
  %s4 = sld [smem:[#allocation0]]
  $region45: #{tpu_custom_call.1} parent=0
    _
  %s6 = ssub.s32 1, %s4
  %s7 = scalar_select 0, %s6, %s4
  $region1: #{tpu_custom_call.1} parent=0
    #allocation2 [shape = 'u8[65536]{0}', space=vmem, size = 0x10000, scoped, tag = 'output window, operand 0']
    #allocation3 [shape = 's32[2]{0}', space=sflag, size = 0x8, scoped, tag = 'scoped memory for tpu_custom_call.1']
    %8 = vsyncpa [#allocation3], 0
    %s9 = scalar_lea.sflag [#allocation3], 1
    %10 = vsyncpa %s9, 0
    loop: start=0, step=1, limit=4
    $region2: #{tpu_custom_call.1} parent=1 // loop_pre_header
      _
    $region3: #{tpu_custom_call.1} parent=1 // loop_header
      %s12 = sphi 0, %s16
      %p13 = scmp.ge.s32.totalorder %s12, 4
      %s19 = sphi 0, %s31
      %s20 = sphi 0, %s27
      %s21 = sphi 0, %s19
      %s22 = sphi 0, %s20
      %s23 = sphi 0, %s21
      %s24 = sphi 0, %s22
      %s36 = sphi 0, %s38
      %s39 = sphi 0, %s36
      %s40 = sphi 0, %s39
      %s56 = sphi 0, %s40
      %s60 = sphi 0, %s60
      %s62 = sphi 0, %s60
      %s63 = sphi 0, %s62
      %s77 = sphi 0, %s63
      %s81 = sphi 0, %s81
      %s83 = sphi 0, %s81
      %s84 = sphi 0, %s83
      %s98 = sphi 0, %s84
      %s106 = sphi 0, %s108
      %s109 = sphi 0, %s106
      %s110 = sphi 0, %s109
      %s126 = sphi 0, %s110
    $region4: #{tpu_custom_call.1} parent=1 // loop_header_branch
      %15 = sbr.rel (%p13) target = $region8
    $region5: #{tpu_custom_call.1} parent=1 // loop_body
      %s17 = ssub.s32 %s12, 1
      %s18 = ssub.s32 %s12, 2
      %s25 = sadd.s32 1, %s20
      %p26 = scmp.ge.s32.totalorder %s25, 1
      %s27 = scalar_select %p26, 0, %s25
      %s28 = sadd.s32 1, %s19
      %s29 = scalar_select %p26, %s28, %s19
      %p30 = scmp.ge.s32.totalorder %s29, 2
      %s31 = scalar_select %p30, 0, %s29
      %s32 = ssub.s32 %s19, %s31
      %s33 = ssub.s32 %s20, %s27
      %s34 = sor.u32 %s32, %s33
      %p35 = scmp.eq.s32.totalorder %s34, 0
      %s37 = sadd.s32 %s36, 1
      %s38 = scalar_select %p35, %s36, %s37
      %p41 = pneg %p35
      %p42 = scmp.eq.s32.totalorder %s12, 1
      %p43 = por %p41, %p42
      %p44 = scmp.ne.s32.totalorder %s36, %s39
      %p45 = scmp.eq.s32.totalorder %s12, 0
      %p46 = por %p44, %p45
      %p47 = scmp.ne.s32.totalorder %s36, %s39
      %p48 = scmp.eq.s32.totalorder %s17, 1
      %p49 = por %p47, %p48
      %p50 = scmp.ne.s32.totalorder %s39, %s40
      %p51 = scmp.eq.s32.totalorder %s17, 0
      %p52 = por %p50, %p51
      %p53 = scmp.ne.s32.totalorder %s39, %s40
      %p54 = scmp.eq.s32.totalorder %s18, 1
      %p55 = por %p53, %p54
      %p57 = scmp.ne.s32.totalorder %s40, %s56
      %p58 = scmp.eq.s32.totalorder %s18, 0
      %p59 = por %p57, %p58
      %s61 = sadd.s32 %s60, 1
      %p64 = scmp.eq.s32.totalorder %s12, 1
      %p65 = scmp.ne.s32.totalorder %s60, %s62
      %p66 = scmp.eq.s32.totalorder %s12, 0
      %p67 = por %p65, %p66
      %p68 = scmp.ne.s32.totalorder %s60, %s62
      %p69 = scmp.eq.s32.totalorder %s17, 1
      %p70 = por %p68, %p69
      %p71 = scmp.ne.s32.totalorder %s62, %s63
      %p72 = scmp.eq.s32.totalorder %s17, 0
      %p73 = por %p71, %p72
      %p74 = scmp.ne.s32.totalorder %s62, %s63
      %p75 = scmp.eq.s32.totalorder %s18, 1
      %p76 = por %p74, %p75
      %p78 = scmp.ne.s32.totalorder %s63, %s77
      %p79 = scmp.eq.s32.totalorder %s18, 0
      %p80 = por %p78, %p79
      %s82 = sadd.s32 %s81, 1
      %p85 = scmp.eq.s32.totalorder %s12, 1
      %p86 = scmp.ne.s32.totalorder %s81, %s83
      %p87 = scmp.eq.s32.totalorder %s12, 0
      %p88 = por %p86, %p87
      %p89 = scmp.ne.s32.totalorder %s81, %s83
      %p90 = scmp.eq.s32.totalorder %s17, 1
      %p91 = por %p89, %p90
      %p92 = scmp.ne.s32.totalorder %s83, %s84
      %p93 = scmp.eq.s32.totalorder %s17, 0
      %p94 = por %p92, %p93
      %p95 = scmp.ne.s32.totalorder %s83, %s84
      %p96 = scmp.eq.s32.totalorder %s18, 1
      %p97 = por %p95, %p96
      %p99 = scmp.ne.s32.totalorder %s84, %s98
      %p100 = scmp.eq.s32.totalorder %s18, 0
      %p101 = por %p99, %p100
      %s102 = ssub.s32 %s19, %s31
      %s103 = ssub.s32 %s20, %s27
      %s104 = sor.u32 %s102, %s103
      %p105 = scmp.eq.s32.totalorder %s104, 0
      %s107 = sadd.s32 %s106, 1
      %s108 = scalar_select %p105, %s106, %s107
      %p111 = pneg %p105
      %p112 = scmp.eq.s32.totalorder %s12, 1
      %p113 = por %p111, %p112
      %p114 = scmp.ne.s32.totalorder %s106, %s109
      %p115 = scmp.eq.s32.totalorder %s12, 0
      %p116 = por %p114, %p115
      %p117 = scmp.ne.s32.totalorder %s106, %s109
      %p118 = scmp.eq.s32.totalorder %s17, 1
      %p119 = por %p117, %p118
      %p120 = scmp.ne.s32.totalorder %s109, %s110
      %p121 = scmp.eq.s32.totalorder %s17, 0
      %p122 = por %p120, %p121
      %p123 = scmp.ne.s32.totalorder %s109, %s110
      %p124 = scmp.eq.s32.totalorder %s18, 1
      %p125 = por %p123, %p124
      %p127 = scmp.ne.s32.totalorder %s110, %s126
      %p128 = scmp.eq.s32.totalorder %s18, 0
      %p129 = por %p127, %p128
      %p130 = scmp.le.s32.totalorder 1, %s12
      %p131 = scmp.lt.s32.totalorder %s12, 3
      %p132 = pnand %p130, %p131
      %p133 = pneg %p132
      // Predicated region
      $region9: #{tpu_custom_call.1} parent=5 // pred_check
        _
      $region10: #{tpu_custom_call.1} parent=5 // pred_check_branch
        %135 = sbr.rel (%p132) target = $region12
      $region11: #{tpu_custom_call.1} parent=5 // pred_region
        %s136 = ssub.s32 %s12, 1
        // Predicated region
        $region13: #{tpu_custom_call.1} parent=11 // pred_check
          %p137 = pneg %p73
        $region14: #{tpu_custom_call.1} parent=11 // pred_check_branch
          %139 = sbr.rel (%p137) target = $region16
        $region15: #{tpu_custom_call.1} parent=11 // pred_region
          _
        $region16: #{tpu_custom_call.1} parent=11 // pred_fallthru
          _
        // Predicated region
        $region17: #{tpu_custom_call.1} parent=11 // pred_check
          %p140 = pneg %p94
        $region18: #{tpu_custom_call.1} parent=11 // pred_check_branch
          %142 = sbr.rel (%p140) target = $region20
        $region19: #{tpu_custom_call.1} parent=11 // pred_region
          _
        $region20: #{tpu_custom_call.1} parent=11 // pred_fallthru
          _
      $region12: #{tpu_custom_call.1} parent=5 // pred_fallthru
        _
      %p143 = scmp.lt.s32.totalorder %s12, 2
      // Predicated region
      $region21: #{tpu_custom_call.1} parent=5 // pred_check
        %p144 = pneg %p143
      $region22: #{tpu_custom_call.1} parent=5 // pred_check_branch
        %146 = sbr.rel (%p144) target = $region24
      $region23: #{tpu_custom_call.1} parent=5 // pred_region
        // Predicated region
        $region25: #{tpu_custom_call.1} parent=23 // pred_check
          %p147 = pneg %p46
        $region26: #{tpu_custom_call.1} parent=23 // pred_check_branch
          %149 = sbr.rel (%p147) target = $region28
        $region27: #{tpu_custom_call.1} parent=23 // pred_region
          %s150 = smul.u32 2, %s20
          %p151 = scmp.lt.s32.totalorder %s19, 1
          %s152 = scalar_select %p151, %s19, 1
          %p153 = scmp.lt.s32.totalorder %s150, 1
          %s154 = scalar_select %p153, %s150, 1
          %s155 = smul.addr %s152, 2
          %s156 = sadd.s32 %s154, %s155
          %s157 = smul.addr %s156, 4
          %s158 = scalar_lea.vmem %s0, %s157
          %s159 = smul.u32 2, %s20
        $region28: #{tpu_custom_call.1} parent=23 // pred_fallthru
          _
      $region24: #{tpu_custom_call.1} parent=5 // pred_fallthru
        _
      %p160 = scmp.le.s32.totalorder 1, %s12
      %p161 = scmp.lt.s32.totalorder %s12, 3
      %p162 = pnand %p160, %p161
      %p163 = pneg %p162
      // Predicated region
      $region29: #{tpu_custom_call.1} parent=5 // pred_check
        _
      $region30: #{tpu_custom_call.1} parent=5 // pred_check_branch
        %165 = sbr.rel (%p162) target = $region32
      $region31: #{tpu_custom_call.1} parent=5 // pred_region
        %s166 = ssub.s32 %s12, 1
        %s167 = smul.u32 2, %s22
        %p168 = scmp.lt.s32.totalorder %s21, 1
        %s169 = scalar_select %p168, %s21, 1
        %p170 = scmp.lt.s32.totalorder %s167, 1
        %s171 = scalar_select %p170, %s167, 1
        %s172 = smul.addr %s169, 2
        %s173 = sadd.s32 %s171, %s172
        %s174 = smul.addr %s173, 4
        %s175 = scalar_lea.vmem %s0, %s174
        %p176 = pneg %p52
        %p177 = pneg %p49
        %p178 = pneg %p73
        %p179 = pneg %p70
        %p180 = pneg %p94
        %p181 = pneg %p91
        %p182 = pneg %p122
        %p183 = pneg %p119
        %s184 = sand.u32 %s109, 1
        %s185 = scalar_lea.sflag [#allocation3], %s184
        %s186 = sand.u32 %s109, 1
        %s187 = smul.addr %s186, 64
        %s188 = scalar_lea.vmem [#allocation2], %s187
        %s189 = smul.u32 2, %s22
        %p190 = scmp.lt.s32.totalorder %s21, 1
        %s191 = scalar_select %p190, %s21, 1
        %p192 = scmp.lt.s32.totalorder %s189, 1
        %s193 = scalar_select %p192, %s189, 1
        %s194 = smul.addr %s191, 2
        %s195 = sadd.s32 %s193, %s194
        %s196 = smul.addr %s195, 4
        %s197 = scalar_lea.vmem %s0, %s196
        %s198 = smul.u32 2, %s22
        %s199 = smul.u32 2, %s22
        %v200 = vld [vmem:[%s1] sm:$0xff]
        %v201 = vld [vmem:[%s1 + $0x8] sm:$0xff]
        %v202 = vld [vmem:[%s1 + $0x10] sm:$0xff]
        %v203 = vld [vmem:[%s1 + $0x18] sm:$0xff]
        %v204 = vld [vmem:[%s197] sm:$0xff]
        %v205 = vld [vmem:[%s2] sm:$0xff]
        %v206 = vld [vmem:[%s2 + $0x8] sm:$0xff]
        %v207 = vld [vmem:[%s2 + $0x10] sm:$0xff]
        %v208 = vld [vmem:[%s2 + $0x18] sm:$0xff]
        %210 = vset.pattern.permute.xlu0 0
        %211 = vperm.xlu0 %210, %v205
        %v212 = vpop.permute.xlu0 %211
        %215 = vset.pattern.permute.xlu0 0
        %216 = vperm.xlu0 %215, %v206
        %v217 = vpop.permute.xlu0 %216
        %220 = vset.pattern.permute.xlu0 0
        %221 = vperm.xlu0 %220, %v207
        %v222 = vpop.permute.xlu0 %221
        %225 = vset.pattern.permute.xlu0 0
        %226 = vperm.xlu0 %225, %v208
        %v227 = vpop.permute.xlu0 %226
        %v230 = vcombine.high %v204, %v204
        %vm231 = vcmask 31744
        %v233 = vsel %vm231, %v200, 0
        %v236 = vsel %vm231, %v201, 0
        %v239 = vsel %vm231, %v202, 0
        %v242 = vsel %vm231, %v203, 0
        %vm244 = vcmask 1043456
        %v245 = vsel %vm244, %v204, 0
        %v247 = vsel %vm244, %v230, 0
        %249 = vmatprep.subr.mxu0 %v247
        %250 = vmatpush1.msra.mxu0 %v245
        %251 = vmatprep.subr.mxu0 0.0
        %252 = vmatpush1.msra.mxu0 0.0
        %253 = vmatprep.subr.mxu0 0.0
        %254 = vmatpush1.msra.mxu0 0.0
        %255 = vmatprep.subr.mxu0 0.0
        %256 = vmatpush1.msra.mxu0 0.0
        %257 = vmatprep.subr.mxu0 0.0
        %258 = vmatpush1.msra.mxu0 0.0
        %259 = vmatprep.subr.mxu0 0.0
        %260 = vmatpush1.msra.mxu0 0.0
        %261 = vmatprep.subr.mxu0 0.0
        %262 = vmatpush1.msra.mxu0 0.0
        %263 = vmatprep.subr.mxu0 0.0
        %264 = vmatpush1.msra.mxu0 0.0
        %265 = vmatprep.subr.mxu0 0.0
        %266 = vmatpush1.msra.mxu0 0.0
        %267 = vmatprep.subr.mxu0 0.0
        %268 = vmatpush1.msra.mxu0 0.0
        %269 = vmatprep.subr.mxu0 0.0
        %270 = vmatpush1.msra.mxu0 0.0
        %271 = vmatprep.subr.mxu0 0.0
        %272 = vmatpush1.msra.mxu0 0.0
        %273 = vmatprep.subr.mxu0 0.0
        %274 = vmatpush1.msra.mxu0 0.0
        %275 = vmatprep.subr.mxu0 0.0
        %276 = vmatpush1.msra.mxu0 0.0
        %277 = vmatprep.subr.mxu0 0.0
        %278 = vmatpush1.msra.mxu0 0.0
        %279 = vmatprep.subr.mxu0 0.0
        %280 = vmatpush1.msra.mxu0 0.0
        %281 = vmatprep.subr.mxu0 0.0
        %282 = vmatpush1.msra.mxu0 0.0
        %283 = vmatprep.subr.mxu0 0.0
        %284 = vmatpush1.msra.mxu0 0.0
        %285 = vmatprep.subr.mxu0 0.0
        %286 = vmatpush1.msra.mxu0 0.0
        %287 = vmatprep.subr.mxu0 0.0
        %288 = vmatpush1.msra.mxu0 0.0
        %289 = vmatprep.subr.mxu0 0.0
        %290 = vmatpush1.msra.mxu0 0.0
        %291 = vmatprep.subr.mxu0 0.0
        %292 = vmatpush1.msra.mxu0 0.0
        %293 = vmatprep.subr.mxu0 0.0
        %294 = vmatpush1.msra.mxu0 0.0
        %295 = vmatprep.subr.mxu0 0.0
        %296 = vmatpush1.msra.mxu0 0.0
        %297 = vmatprep.subr.mxu0 0.0
        %298 = vmatpush1.msra.mxu0 0.0
        %299 = vmatprep.subr.mxu0 0.0
        %300 = vmatpush1.msra.mxu0 0.0
        %301 = vmatprep.subr.mxu0 0.0
        %302 = vmatpush1.msra.mxu0 0.0
        %303 = vmatprep.subr.mxu0 0.0
        %304 = vmatpush1.msra.mxu0 0.0
        %305 = vmatprep.subr.mxu0 0.0
        %306 = vmatpush1.msra.mxu0 0.0
        %307 = vmatprep.subr.mxu0 0.0
        %308 = vmatpush1.msra.mxu0 0.0
        %309 = vmatprep.subr.mxu0 0.0
        %310 = vmatpush1.msra.mxu0 0.0
        %311 = vmatprep.subr.mxu0 0.0
        %312 = vmatpush1.msra.mxu0 0.0
        %313 = vmatprep.mubr.f32.mxu0 0.0
        %314 = vmatmul.mubr.f32.gmra.mrb[0].mxu0 %v233
        %v315 = vpop.f32.mrb[0].mxu0
        %v316 = vadd.f32 %v212, %v315
        %v317 = vpop.f32.mrb[0].mxu0
        %v318 = vadd.f32 %v212, %v317
        %319 = vmatprep.mubr.f32.mxu0 0.0
        %320 = vmatmul.mubr.f32.gmra.mrb[0].mxu0 %v236
        %v321 = vpop.f32.mrb[0].mxu0
        %v322 = vadd.f32 %v217, %v321
        %v323 = vpop.f32.mrb[0].mxu0
        %v324 = vadd.f32 %v217, %v323
        %325 = vmatprep.mubr.f32.mxu0 0.0
        %326 = vmatmul.mubr.f32.gmra.mrb[0].mxu0 %v239
        %v327 = vpop.f32.mrb[0].mxu0
        %v328 = vadd.f32 %v222, %v327
        %v329 = vpop.f32.mrb[0].mxu0
        %v330 = vadd.f32 %v222, %v329
        %331 = vmatprep.mubr.f32.mxu0 0.0
        %332 = vmatmul.mubr.f32.gmra.mrb[0].mxu0 %v242
        %v333 = vpop.f32.mrb[0].mxu0
        %v334 = vadd.f32 %v227, %v333
        %v335 = vpop.f32.mrb[0].mxu0
        %v336 = vadd.f32 %v227, %v335
        %337 = vdwg.mxu0
        %v338 = vadd.f32 %v316, 3.0
        %v339 = vadd.f32 %v318, 3.0
        %v340 = vadd.f32 %v322, 3.0
        %v341 = vadd.f32 %v324, 3.0
        %v342 = vadd.f32 %v328, 3.0
        %v343 = vadd.f32 %v330, 3.0
        %v344 = vadd.f32 %v334, 3.0
        %v345 = vadd.f32 %v336, 3.0
        %v346 = vmax.f32 %v338, 0.0
        %v347 = vmax.f32 %v339, 0.0
        %v348 = vmax.f32 %v340, 0.0
        %v349 = vmax.f32 %v341, 0.0
        %v350 = vmax.f32 %v342, 0.0
        %v351 = vmax.f32 %v343, 0.0
        %v352 = vmax.f32 %v344, 0.0
        %v353 = vmax.f32 %v345, 0.0
        %v354 = vmin.f32 %v346, 6.0
        %v355 = vmin.f32 %v347, 6.0
        %v356 = vmin.f32 %v348, 6.0
        %v357 = vmin.f32 %v349, 6.0
        %v358 = vmin.f32 %v350, 6.0
        %v359 = vmin.f32 %v351, 6.0
        %v360 = vmin.f32 %v352, 6.0
        %v361 = vmin.f32 %v353, 6.0
        %v362 = vmul.f32 %v316, %v354
        %v363 = vmul.f32 %v318, %v355
        %v364 = vmul.f32 %v322, %v356
        %v365 = vmul.f32 %v324, %v357
        %v366 = vmul.f32 %v328, %v358
        %v367 = vmul.f32 %v330, %v359
        %v368 = vmul.f32 %v334, %v360
        %v369 = vmul.f32 %v336, %v361
        %v370 = vmul.f32 %v362, 0.16666667
        %v371 = vmul.f32 %v363, 0.16666667
        %v372 = vmul.f32 %v364, 0.16666667
        %v373 = vmul.f32 %v365, 0.16666667
        %v374 = vmul.f32 %v366, 0.16666667
        %v375 = vmul.f32 %v367, 0.16666667
        %v376 = vmul.f32 %v368, 0.16666667
        %v377 = vmul.f32 %v369, 0.16666667
        %378 = vst [vmem:[%s188] sm:$0xff] %v370
        %379 = vst [vmem:[%s188 + $0x8] sm:$0xff] %v371
        %380 = vst [vmem:[%s188 + $0x10] sm:$0xff] %v372
        %381 = vst [vmem:[%s188 + $0x18] sm:$0xff] %v373
        %382 = vst [vmem:[%s188 + $0x20] sm:$0xff] %v374
        %383 = vst [vmem:[%s188 + $0x28] sm:$0xff] %v375
        %384 = vst [vmem:[%s188 + $0x30] sm:$0xff] %v376
        %385 = vst [vmem:[%s188 + $0x38] sm:$0xff] %v377
        %s386 = sand.u32 %s109, 1
        %s387 = scalar_lea.sflag [#allocation3], %s386
        %s388 = sand.u32 %s109, 1
        %s389 = smul.addr %s388, 64
        %s390 = scalar_lea.vmem [#allocation2], %s389
        // Predicated region
        $region33: #{tpu_custom_call.1} parent=31 // pred_check
          %p391 = pneg %p119
        $region34: #{tpu_custom_call.1} parent=31 // pred_check_branch
          %393 = sbr.rel (%p391) target = $region36
        $region35: #{tpu_custom_call.1} parent=31 // pred_region
          %s394 = smul.u32 2, %s22
          %s396 = ssub.s32 1024, 1024
          %397 = vsyncadd %s387, %s396
          %s398 = smul.addr %s21, 8
          %s399 = sadd.s32 %s394, %s398
          %s400 = smul.addr %s399, 128
          %s401 = scalar_lea.hbm %s3, %s400
          %s402 = sshll.u32 %s390, 4
          %s403 = int_to_ptr.vmem [resolvable:$true] %s402
          %408 = dma.vmem_to_hbm [thread:$0]  %s403, 1024, %s401, %s387, 256, 256, 16
        $region36: #{tpu_custom_call.1} parent=31 // pred_fallthru
          _
      $region32: #{tpu_custom_call.1} parent=5 // pred_fallthru
        _
      %p409 = scmp.le.s32.totalorder 2, %s12
      // Predicated region
      $region37: #{tpu_custom_call.1} parent=5 // pred_check
        %p410 = pneg %p409
      $region38: #{tpu_custom_call.1} parent=5 // pred_check_branch
        %412 = sbr.rel (%p410) target = $region40
      $region39: #{tpu_custom_call.1} parent=5 // pred_region
        %s413 = ssub.s32 %s12, 2
        // Predicated region
        $region41: #{tpu_custom_call.1} parent=39 // pred_check
          %p414 = pneg %p125
        $region42: #{tpu_custom_call.1} parent=39 // pred_check_branch
          %416 = sbr.rel (%p414) target = $region44
        $region43: #{tpu_custom_call.1} parent=39 // pred_region
          %s417 = sand.u32 %s110, 1
          %s418 = scalar_lea.sflag [#allocation3], %s417
          %s419 = sand.u32 %s110, 1
          %s420 = smul.addr %s419, 64
          %s421 = scalar_lea.vmem [#allocation2], %s420
          %422 = dma.done %s418, 1024
        $region44: #{tpu_custom_call.1} parent=39 // pred_fallthru
          _
      $region40: #{tpu_custom_call.1} parent=5 // pred_fallthru
        _
    $region6: #{tpu_custom_call.1} parent=1 // loop_footer
      %s16 = sadd.s32 1, %s12
    $region7: #{tpu_custom_call.1} parent=1 // loop_footer_branch
      %11 = sbr.rel target = $region3
    $region8: #{tpu_custom_call.1} parent=1 // loop_exit
      _
    %423 = vsyncpa [#allocation3], 1
    %s424 = scalar_lea.sflag [#allocation3], 1
    %425 = vsyncpa %s424, 1

</llo_original>
